<compile_context>
chip_gen: v7x
topology: tpu7x:2x2x1
jax: 0.10.0
libtpu: 0.0.40
codegen_flags: <defaults>
</compile_context>

<pallas_src>
import functools

import jax
import jax.numpy as jnp
from jax.experimental import pallas as pl
from jax.experimental.pallas import tpu as pltpu


def _round_up(x, m):
    return ((x + m - 1) // m) * m


def _cdiv(a, b):
    return -(-a // b)


def _choose_batch_tile(batch, feat_width, itemsize, packing):
    # Double-buffered feature tile must fit the v5e 16 MiB scoped-VMEM default and
    # leave headroom against v7x's 64 MiB physical VMEM.
    per_buffer_budget = 4 * 1024 * 1024
    tb = per_buffer_budget // max(1, feat_width * itemsize)
    tb = max(packing, min(512, (tb // packing) * packing))
    # Keep >= ~4 batch tiles so the "parallel" batch axis can shard across the two
    # TensorCores on v7x (neutral on single-TC v5e/v6e).
    tb = min(tb, max(packing, _round_up(_cdiv(batch, 4), packing)))
    return tb


# ----------------------------- kernels ---------------------------------------


def _row_validity(tb, tile_b, batch):
    # Mask for rows of this tile that correspond to real batch entries.
    row = pl.program_id(0) * tile_b + jax.lax.broadcasted_iota(jnp.int32, (tb, 1), 0)
    return row < batch


def _linear_kernel(x_ref, wt_ref, b_ref, logits_ref, *, compute_dtype):
    # x: (TB, F) native dtype; wt: (F, L_pad) compute dtype; b: (1, L_pad) f32
    x = x_ref[...].astype(compute_dtype)
    logits = jnp.dot(x, wt_ref[...], preferred_element_type=jnp.float32) + b_ref[...]
    logits_ref[...] = logits.astype(logits_ref.dtype)


def _linear_ce_kernel(x_ref, wt_ref, b_ref, lab_ref, logits_ref, loss_ref, *,
                      num_labels, batch, tile_b, compute_dtype):
    """Linear + per-tile CrossEntropy partial sum (labels are int class indices)."""
    x = x_ref[...].astype(compute_dtype)
    logits = jnp.dot(x, wt_ref[...], preferred_element_type=jnp.float32) + b_ref[...]
    logits_ref[...] = logits.astype(logits_ref.dtype)

    tb, l_pad = logits.shape
    col = jax.lax.broadcasted_iota(jnp.int32, (tb, l_pad), 1)
    # Padded label columns must not contribute to logsumexp.
    masked = jnp.where(col < num_labels, logits, -jnp.inf)
    m = jnp.max(masked, axis=1, keepdims=True)                                # (TB,1)
    lse = jnp.log(jnp.sum(jnp.exp(masked - m), axis=1, keepdims=True)) + m    # (TB,1)

    lab = lab_ref[...]                                                        # (TB,1) int32
    picked = jnp.sum(jnp.where(col == lab, logits, 0.0), axis=1, keepdims=True)
    # TODO(synk): torch CrossEntropyLoss ignore_index=-100 semantics not implemented.
    valid = _row_validity(tb, tile_b, batch)
    # Select (not multiply): stale rows of a clipped last block may be non-finite.
    per_ex = jnp.where(valid, lse - picked, 0.0)                              # (TB,1)
    partial = jnp.sum(per_ex, axis=0, keepdims=True)                          # (1,1)
    loss_ref[0] = jnp.broadcast_to(partial, (8, 128))


def _linear_mse_kernel(x_ref, wt_ref, b_ref, lab_ref, logits_ref, loss_ref, *,
                       batch, tile_b, compute_dtype):
    """Linear + per-tile MSE partial sum (num_labels == 1 regression head)."""
    x = x_ref[...].astype(compute_dtype)
    logits = jnp.dot(x, wt_ref[...], preferred_element_type=jnp.float32) + b_ref[...]
    logits_ref[...] = logits.astype(logits_ref.dtype)

    tb, l_pad = logits.shape
    col = jax.lax.broadcasted_iota(jnp.int32, (tb, l_pad), 1)
    pred = jnp.sum(jnp.where(col == 0, logits, 0.0), axis=1, keepdims=True)   # (TB,1)
    diff = pred - lab_ref[...]                                                # (TB,1)
    valid = _row_validity(tb, tile_b, batch)
    per_ex = jnp.where(valid, diff * diff, 0.0)                               # select
    partial = jnp.sum(per_ex, axis=0, keepdims=True)                          # (1,1)
    loss_ref[0] = jnp.broadcast_to(partial, (8, 128))


# ----------------------------- module ----------------------------------------


class DecoderHead:
    """JAX/Pallas port of the torch DecoderHead ('transformer' branch: Linear(F, L))."""
    # TODO(synk): the argparse / GLUEMODEL env branch only changes the Linear input
    # width (features_size*4); it is config plumbing, not forward compute, so the
    # transformer-style Linear(features_size, num_labels) path is implemented.

    def __init__(self, features_size, num_labels, key,
                 param_dtype=jnp.float32, compute_dtype=jnp.bfloat16):
        self.features_size = features_size
        self.num_labels = num_labels
        self.compute_dtype = compute_dtype
        self.l_pad = _round_up(num_labels, 128)        # lane-dense output width

        kw, kb = jax.random.split(key)
        bound = 1.0 / (features_size ** 0.5)           # torch nn.Linear default init range
        w = jax.random.uniform(kw, (features_size, num_labels), param_dtype,
                               minval=-bound, maxval=bound)
        b = jax.random.uniform(kb, (1, num_labels), param_dtype,
                               minval=-bound, maxval=bound)
        # Pre-transposed, column-zero-padded weight stored in the MXU compute dtype.
        self.wt = (jnp.zeros((features_size, self.l_pad), param_dtype)
                   .at[:, :num_labels].set(w)).astype(compute_dtype)
        # Bias stays f32 (tiny; added after the f32 MXU accumulation).
        self.b = (jnp.zeros((1, self.l_pad), jnp.float32)
                  .at[:, :num_labels].set(b.astype(jnp.float32)))

    def __call__(self, features, labels=None, trim_logits=True):
        B = features.shape[0]
        feats = features.reshape(B, -1)                # .view(-1, prod(rest)); native dtype
        F = feats.shape[1]
        assert F == self.features_size, "flattened feature width mismatch"

        itemsize = jnp.dtype(feats.dtype).itemsize
        packing = max(8, 32 // itemsize)               # sublane packing: 8 f32 / 16 bf16
        tb = _choose_batch_tile(B, F, itemsize, packing)
        num_tiles = _cdiv(B, tb)                       # ragged last tile masked in-kernel
        grid = (num_tiles,)

        logits_dtype = (feats.dtype if jnp.issubdtype(feats.dtype, jnp.floating)
                        else jnp.float32)

        x_spec = pl.BlockSpec((tb, F), lambda i: (i, 0))
        wt_spec = pl.BlockSpec((F, self.l_pad), lambda i: (0, 0))    # VMEM resident
        b_spec = pl.BlockSpec((1, self.l_pad), lambda i: (0, 0))     # VMEM resident
        logits_spec = pl.BlockSpec((tb, self.l_pad), lambda i: (i, 0))
        cparams = pltpu.CompilerParams(
            dimension_semantics=("parallel",),
            vmem_limit_bytes=32 * 1024 * 1024)

        param_bytes = (self.wt.size * jnp.dtype(self.wt.dtype).itemsize
                       + self.b.size * 4)
        logits_bytes = B * self.l_pad * jnp.dtype(logits_dtype).itemsize
        base_bytes = feats.size * itemsize + param_bytes + logits_bytes
        flops = 2 * B * F * self.l_pad

        if labels is None:
            logits_p = pl.pallas_call(
                functools.partial(_linear_kernel, compute_dtype=self.compute_dtype),
                out_shape=jax.ShapeDtypeStruct((B, self.l_pad), logits_dtype),
                grid_spec=pltpu.PrefetchScalarGridSpec(
                    num_scalar_prefetch=0, grid=grid,
                    in_specs=[x_spec, wt_spec, b_spec],
                    out_specs=logits_spec),
                compiler_params=cparams,
                cost_estimate=pl.CostEstimate(flops=flops, transcendentals=0,
                                              bytes_accessed=base_bytes),
            )(feats, self.wt, self.b)
            logits = logits_p[:, :self.num_labels] if trim_logits else logits_p
            return (logits, feats)

        if self.num_labels == 1:
            lab = labels.reshape(B, 1).astype(jnp.float32)
            kernel = functools.partial(_linear_mse_kernel, batch=B, tile_b=tb,
                                       compute_dtype=self.compute_dtype)
            trans = 0
        else:
            lab = labels.reshape(B, 1).astype(jnp.int32)
            kernel = functools.partial(_linear_ce_kernel, num_labels=self.num_labels,
                                       batch=B, tile_b=tb,
                                       compute_dtype=self.compute_dtype)
            trans = B * self.l_pad

        lab_spec = pl.BlockSpec((tb, 1), lambda i: (i, 0))
        loss_spec = pl.BlockSpec((1, 8, 128), lambda i: (i, 0, 0))

        logits_p, partials = pl.pallas_call(
            kernel,
            out_shape=(jax.ShapeDtypeStruct((B, self.l_pad), logits_dtype),
                       jax.ShapeDtypeStruct((num_tiles, 8, 128), jnp.float32)),
            grid_spec=pltpu.PrefetchScalarGridSpec(
                num_scalar_prefetch=0, grid=grid,
                in_specs=[x_spec, wt_spec, b_spec, lab_spec],
                out_specs=(logits_spec, loss_spec)),
            compiler_params=cparams,
            cost_estimate=pl.CostEstimate(
                flops=flops, transcendentals=trans,
                bytes_accessed=base_bytes + B * 4 + num_tiles * 8 * 128 * 4),
        )(feats, self.wt, self.b, lab)

        loss = jnp.sum(partials[:, 0, 0]) / B          # mean over the real batch
        logits = logits_p[:, :self.num_labels] if trim_logits else logits_p
        return (loss, logits, feats)


# ----------------------------- reference & test -------------------------------


def _ref_forward(head, features, labels=None):
    """Pure-JAX reference (same bf16 weights / input cast, f32 accumulation)."""
    B = features.shape[0]
    feats = features.reshape(B, -1)
    x = feats.astype(head.compute_dtype)
    wt = head.wt[:, :head.num_labels]
    b = head.b[:, :head.num_labels]
    logits = jnp.dot(x, wt, preferred_element_type=jnp.float32) + b
    if labels is None:
        return (logits, feats)
    if head.num_labels == 1:
        loss = jnp.mean((logits.reshape(-1) - labels.reshape(-1).astype(jnp.float32)) ** 2)
    else:
        lse = jax.nn.logsumexp(logits, axis=1)
        picked = jnp.take_along_axis(logits, labels.reshape(-1, 1).astype(jnp.int32),
                                     axis=1)[:, 0]
        loss = jnp.mean(lse - picked)
    return (loss, logits, feats)


if __name__ == "__main__":
    key = jax.random.PRNGKey(0)
    k_x, k_lab, k_w1, k_w2, k_labr, k_x2, k_lab2 = jax.random.split(key, 7)

    # small shapes: batch=8, features flatten to features_size=32 (4*8)
    B, F, L = 8, 32, 4
    x = jax.random.normal(k_x, (B, 4, 8), dtype=jnp.float32)
    labels = jax.random.randint(k_lab, (B,), 0, L, dtype=jnp.int32)

    # classification head (CrossEntropy path)
    head = DecoderHead(features_size=F, num_labels=L, key=k_w1)
    loss, logits, feats = head(x, labels)
    jax.block_until_ready((loss, logits, feats))
    r_loss, r_logits, r_feats = _ref_forward(head, x, labels)
    assert jnp.allclose(logits, r_logits, atol=1e-3), "CE logits mismatch"
    assert jnp.allclose(loss, r_loss, atol=1e-3), "CE loss mismatch"

    # no-label path (logits only)
    logits2, feats2 = head(x)
    jax.block_until_ready(logits2)
    assert jnp.allclose(logits2, r_logits, atol=1e-3), "no-label logits mismatch"

    # ragged batch: exercises the partial last tile + in-kernel row masking
    B2 = 10
    x2 = jax.random.normal(k_x2, (B2, 4, 8), dtype=jnp.float32)
    labels2 = jax.random.randint(k_lab2, (B2,), 0, L, dtype=jnp.int32)
    loss_r, logits_r, _ = head(x2, labels2)
    jax.block_until_ready((loss_r, logits_r))
    rr_loss, rr_logits, _ = _ref_forward(head, x2, labels2)
    assert jnp.allclose(logits_r, rr_logits, atol=1e-3), "ragged logits mismatch"
    assert jnp.allclose(loss_r, rr_loss, atol=1e-3), "ragged loss mismatch"

    # regression head (MSE path, num_labels == 1)
    head1 = DecoderHead(features_size=F, num_labels=1, key=k_w2)
    reg_labels = jax.random.normal(k_labr, (B,), dtype=jnp.float32)
    loss1, logits1, _ = head1(x, reg_labels)
    jax.block_until_ready((loss1, logits1))
    r_loss1, r_logits1, _ = _ref_forward(head1, x, reg_labels)
    assert jnp.allclose(logits1, r_logits1, atol=1e-3), "MSE logits mismatch"
    assert jnp.allclose(loss1, r_loss1, atol=1e-3), "MSE loss mismatch"

    print("KERNEL_OK")
</pallas_src>

<mosaic_0001>
module attributes {stable_mosaic.version = 11 : i64} {
  func.func @_linear_ce_kernel(%arg0: i32, %arg1: memref<8x32xf32, #tpu.memory_space<vmem>>, %arg2: memref<32x128xbf16, #tpu.memory_space<vmem>>, %arg3: memref<1x128xf32, #tpu.memory_space<vmem>>, %arg4: memref<8x1xi32, #tpu.memory_space<vmem>>, %arg5: memref<8x128xf32, #tpu.memory_space<vmem>>, %arg6: memref<1x8x128xf32, #tpu.memory_space<vmem>>) attributes {dimension_semantics = [#tpu.dimension_semantics<parallel>], iteration_bounds = array<i64: 1>, scalar_prefetch = 0 : i64, scratch_operands = 0 : i64, tpu.core_type = #tpu.core_type<tc>, window_params = [{transform_indices = @transform_0, window_bounds = array<i64: 8, 32>}, {pipeline_mode = #tpu.pipeline_mode<synchronous>, transform_indices = @transform_1, window_bounds = array<i64: 32, 128>}, {pipeline_mode = #tpu.pipeline_mode<synchronous>, transform_indices = @transform_2, window_bounds = array<i64: 1, 128>}, {transform_indices = @transform_3, window_bounds = array<i64: 8, 1>}, {transform_indices = @transform_4, window_bounds = array<i64: 8, 128>}, {transform_indices = @transform_5, window_bounds = array<i64: 1, 8, 128>}]} {
    %c0 = arith.constant 0 : index
    %c0_0 = arith.constant 0 : index
    %0 = vector.load %arg1[%c0, %c0_0] : memref<8x32xf32, #tpu.memory_space<vmem>>, vector<8x32xf32>
    %1 = arith.truncf %0 : vector<8x32xf32> to vector<8x32xbf16>
    %c0_1 = arith.constant 0 : index
    %c0_2 = arith.constant 0 : index
    %2 = vector.load %arg2[%c0_1, %c0_2] : memref<32x128xbf16, #tpu.memory_space<vmem>>, vector<32x128xbf16>
    %cst = arith.constant dense<0.000000e+00> : vector<8x128xf32>
    %3 = tpu.matmul %1, %2, %cst {dimension_numbers = #tpu.dot_dimension_numbers<[1], [0], [0], [1], [0, 0, 1, 1], [], []>} : vector<8x32xbf16>, vector<32x128xbf16>, vector<8x128xf32> -> vector<8x128xf32>
    %c0_3 = arith.constant 0 : index
    %c0_4 = arith.constant 0 : index
    %4 = vector.load %arg3[%c0_3, %c0_4] : memref<1x128xf32, #tpu.memory_space<vmem>>, vector<1x128xf32>
    %5 = vector.broadcast %4 : vector<1x128xf32> to vector<8x128xf32>
    %6 = arith.addf %3, %5 : vector<8x128xf32>
    %c0_5 = arith.constant 0 : index
    %c0_6 = arith.constant 0 : index
    %7 = vector.load %arg5[%c0_5, %c0_6] : memref<8x128xf32, #tpu.memory_space<vmem>>, vector<8x128xf32>
    tpu.vector_store %arg5[%c0_5, %c0_6], %6 {strides = array<i32>} : memref<8x128xf32, #tpu.memory_space<vmem>>, vector<8x128xf32>,
    %8 = tpu.iota {dimensions = array<i32: 1>} : vector<8x128xi32>
    %c4_i32 = arith.constant 4 : i32
    %9 = vector.broadcast %c4_i32 : i32 to vector<8x128xi32>
    %10 = arith.cmpi slt, %8, %9 : vector<8x128xi32>
    %cst_7 = arith.constant 0xFF800000 : f32
    %11 = vector.broadcast %cst_7 : f32 to vector<8x128xf32>
    %12 = arith.select %10, %6, %11 : vector<8x128xi1>, vector<8x128xf32>
    %cst_8 = arith.constant dense<0xFF800000> : vector<8xf32>
    %13 = vector.multi_reduction <maximumf>, %12, %cst_8 [1] : vector<8x128xf32> to vector<8xf32>
    %14 = vector.shape_cast %13 : vector<8xf32> to vector<8x1xf32>
    %15 = vector.broadcast %14 : vector<8x1xf32> to vector<8x128xf32>
    %16 = arith.subf %12, %15 : vector<8x128xf32>
    %17 = math.exp %16 : vector<8x128xf32>
    %cst_9 = arith.constant dense<0.000000e+00> : vector<8xf32>
    %18 = vector.multi_reduction <add>, %17, %cst_9 [1] : vector<8x128xf32> to vector<8xf32>
    %19 = vector.shape_cast %18 : vector<8xf32> to vector<8x1xf32>
    %20 = math.log %19 : vector<8x1xf32>
    %21 = arith.addf %20, %14 : vector<8x1xf32>
    %c0_10 = arith.constant 0 : index
    %c0_11 = arith.constant 0 : index
    %22 = vector.load %arg4[%c0_10, %c0_11] : memref<8x1xi32, #tpu.memory_space<vmem>>, vector<8x1xi32>
    %23 = vector.broadcast %22 : vector<8x1xi32> to vector<8x128xi32>
    %24 = arith.cmpi eq, %8, %23 : vector<8x128xi32>
    %cst_12 = arith.constant 0.000000e+00 : f32
    %25 = vector.broadcast %cst_12 : f32 to vector<8x128xf32>
    %26 = arith.select %24, %6, %25 : vector<8x128xi1>, vector<8x128xf32>
    %cst_13 = arith.constant dense<0.000000e+00> : vector<8xf32>
    %27 = vector.multi_reduction <add>, %26, %cst_13 [1] : vector<8x128xf32> to vector<8xf32>
    %28 = vector.shape_cast %27 : vector<8xf32> to vector<8x1xf32>
    %c8_i32 = arith.constant 8 : i32
    %29 = arith.muli %arg0, %c8_i32 : i32
    %30 = tpu.iota {dimensions = array<i32: 0>} : vector<8x1xi32>
    %31 = vector.broadcast %29 : i32 to vector<8x1xi32>
    %32 = arith.addi %31, %30 : vector<8x1xi32>
    %c8_i32_14 = arith.constant 8 : i32
    %33 = vector.broadcast %c8_i32_14 : i32 to vector<8x1xi32>
    %34 = arith.cmpi slt, %32, %33 : vector<8x1xi32>
    %35 = arith.subf %21, %28 : vector<8x1xf32>
    %cst_15 = arith.constant 0.000000e+00 : f32
    %36 = vector.broadcast %cst_15 : f32 to vector<8x1xf32>
    %37 = arith.select %34, %35, %36 : vector<8x1xi1>, vector<8x1xf32>
    %cst_16 = arith.constant dense<0.000000e+00> : vector<1xf32>
    %38 = vector.multi_reduction <add>, %37, %cst_16 [0] : vector<8x1xf32> to vector<1xf32>
    %39 = vector.shape_cast %38 : vector<1xf32> to vector<1x1xf32>
    %40 = vector.shape_cast %39 : vector<1x1xf32> to vector<1x1xf32>
    %41 = vector.broadcast %40 : vector<1x1xf32> to vector<8x128xf32>
    %c0_17 = arith.constant 0 : index
    %c0_18 = arith.constant 0 : index
    %c0_19 = arith.constant 0 : index
    %42 = vector.load %arg6[%c0_17, %c0_18, %c0_19] : memref<1x8x128xf32, #tpu.memory_space<vmem>>, vector<1x8x128xf32>
    %43 = vector.shape_cast %42 : vector<1x8x128xf32> to vector<8x128xf32>
    %44 = vector.shape_cast %41 : vector<8x128xf32> to vector<1x8x128xf32>
    tpu.vector_store %arg6[%c0_17, %c0_18, %c0_19], %44 {strides = array<i32>} : memref<1x8x128xf32, #tpu.memory_space<vmem>>, vector<1x8x128xf32>,
    return
  }
  func.func @transform_0(%arg0: i32) -> (i32, i32) {
    %c0_i32 = arith.constant 0 : i32
    %c0_i32_0 = arith.constant 0 : i32
    return %arg0, %c0_i32 : i32, i32
  }
  func.func @transform_1(%arg0: i32) -> (i32, i32) {
    %c0_i32 = arith.constant 0 : i32
    %c0_i32_0 = arith.constant 0 : i32
    %c0_i32_1 = arith.constant 0 : i32
    return %c0_i32, %c0_i32_0 : i32, i32
  }
  func.func @transform_2(%arg0: i32) -> (i32, i32) {
    %c0_i32 = arith.constant 0 : i32
    %c0_i32_0 = arith.constant 0 : i32
    %c0_i32_1 = arith.constant 0 : i32
    return %c0_i32, %c0_i32_0 : i32, i32
  }
  func.func @transform_3(%arg0: i32) -> (i32, i32) {
    %c0_i32 = arith.constant 0 : i32
    %c0_i32_0 = arith.constant 0 : i32
    return %arg0, %c0_i32 : i32, i32
  }
  func.func @transform_4(%arg0: i32) -> (i32, i32) {
    %c0_i32 = arith.constant 0 : i32
    %c0_i32_0 = arith.constant 0 : i32
    return %arg0, %c0_i32 : i32, i32
  }
  func.func @transform_5(%arg0: i32) -> (i32, i32, i32) {
    %c0_i32 = arith.constant 0 : i32
    %c0_i32_0 = arith.constant 0 : i32
    %c0_i32_1 = arith.constant 0 : i32
    return %arg0, %c0_i32, %c0_i32_0 : i32, i32, i32
  }
}

</mosaic_0001>

<llo_original>
// kernel: tpu_custom_call.1
$region0: #{tpu_custom_call.1}
  #allocation0 [shape = 'u32[]', space=smem, size = 0x4, offset = 0x4, fixed_abs, tag = 'smem constant byte address 0x4 - core index']
  #allocation1 [shape = 'u32[144,128]{1,0:T(1,128)}', space=vmem, size = 0x12000, scoped, tag = 'internal scratch']
  %s0 = inlined_call_operand.vmem [shape: f32[8,32], index: 0, kind: input, shape index: {}]
  %s1 = inlined_call_operand.hbm [shape: bf16[32,128], index: 1, kind: input, shape index: {}]
  %s2 = inlined_call_operand.vmem [shape: f32[1,128], index: 2, kind: input, shape index: {}]
  %s3 = inlined_call_operand.vmem [shape: s32[8,1], index: 3, kind: input, shape index: {}]
  %s4 = inlined_call_operand.hbm [shape: f32[8,128], index: 4, kind: output, shape index: {0}]
  %s5 = inlined_call_operand.hbm [shape: f32[1,8,128], index: 5, kind: output, shape index: {1}]
  %6 = xla_tuple %s4, %s5
  %s7 = sld [smem:[#allocation0]]
  $region38: #{tpu_custom_call.1} parent=0
    _
  %s9 = ssub.s32 1, %s7
  %s10 = scalar_select 0, %s9, %s7
  $region1: #{tpu_custom_call.1} parent=0
    #allocation2 [shape = 'u8[8192]{0}', space=vmem, size = 0x2000, scoped, tag = 'input window, operand 1, single buffered']
    #allocation3 [shape = 's32[1]{0}', space=sflag, size = 0x4, scoped, tag = 'scoped memory for tpu_custom_call.1']
    #allocation4 [shape = 's32[1]{0}', space=sflag, size = 0x4, scoped, tag = 'scoped memory for tpu_custom_call.1']
    #allocation5 [shape = 'u8[4096]{0}', space=vmem, size = 0x1000, scoped, tag = 'output window, operand 0, single buffered']
    #allocation6 [shape = 'u8[4096]{0}', space=vmem, size = 0x1000, scoped, tag = 'output window, operand 1, single buffered']
    #allocation7 [shape = 's32[1]{0}', space=sflag, size = 0x4, scoped, tag = 'scoped memory for tpu_custom_call.1']
    %11 = vsyncpa [#allocation3], 0
    %12 = vsyncpa [#allocation4], 0
    %13 = vsyncpa [#allocation7], 0
    // Predicated region
    $region2: #{tpu_custom_call.1} parent=1 // pred_check
      _
    $region3: #{tpu_custom_call.1} parent=1 // pred_check_branch
      %15 = sbr.rel (0) target = $region5
    $region4: #{tpu_custom_call.1} parent=1 // pred_region
      _
    $region5: #{tpu_custom_call.1} parent=1 // pred_fallthru
      _
    // Predicated region
    $region6: #{tpu_custom_call.1} parent=1 // pred_check
      _
    $region7: #{tpu_custom_call.1} parent=1 // pred_check_branch
      %17 = sbr.rel (0) target = $region9
    $region8: #{tpu_custom_call.1} parent=1 // pred_region
      %s19 = ssub.s32 256, 256
      %20 = vsyncadd [#allocation3], %s19
      %s21 = sshll.u32 [#allocation2], 4
      %s22 = int_to_ptr.vmem [resolvable:$true] %s21
      %27 = dma.hbm_to_vmem [thread:$0]  %s1, 256, %s22, [#allocation3], 64, 64, 4
    $region9: #{tpu_custom_call.1} parent=1 // pred_fallthru
      _
    // Predicated region
    $region10: #{tpu_custom_call.1} parent=1 // pred_check
      _
    $region11: #{tpu_custom_call.1} parent=1 // pred_check_branch
      %29 = sbr.rel (0) target = $region13
    $region12: #{tpu_custom_call.1} parent=1 // pred_region
      _
    $region13: #{tpu_custom_call.1} parent=1 // pred_fallthru
      _
    // Predicated region
    $region14: #{tpu_custom_call.1} parent=1 // pred_check
      _
    $region15: #{tpu_custom_call.1} parent=1 // pred_check_branch
      %31 = sbr.rel (0) target = $region17
    $region16: #{tpu_custom_call.1} parent=1 // pred_region
      _
    $region17: #{tpu_custom_call.1} parent=1 // pred_fallthru
      _
    // Predicated region
    $region18: #{tpu_custom_call.1} parent=1 // pred_check
      _
    $region19: #{tpu_custom_call.1} parent=1 // pred_check_branch
      %33 = sbr.rel (0) target = $region21
    $region20: #{tpu_custom_call.1} parent=1 // pred_region
      %34 = dma.done [#allocation3], 256
    $region21: #{tpu_custom_call.1} parent=1 // pred_fallthru
      _
    %v36 = vld [vmem:[%s0] sm:$0xff]
    %v37 = vpack.c.bf16 %v36, %v36
    %v38 = vld [vmem:[#allocation2] sm:$0xf]
    %v39 = vld [vmem:[#allocation2 + $0x4] sm:$0xf]
    %v40 = vld [vmem:[#allocation2 + $0x8] sm:$0xf]
    %v41 = vld [vmem:[#allocation2 + $0xc] sm:$0xf]
    %v42 = vld [vmem:[%s2] sm:$0x1]
    %v44 = vlaneseq
    %v45 = vshrl.u32 %v44, 7
    %v46 = vsub.s32 0, %v45
    %v47 = vrot.slane %v42, %v46
    %v53 = vunpack.c.l.b16 %v38
    %v54 = vunpack.c.l.b16 %v39
    %v55 = vunpack.c.l.b16 %v40
    %v56 = vunpack.c.l.b16 %v41
    %v57 = vpack.c.b16 %v54, %v53
    %v58 = vpack.c.b16 %v56, %v55
    %vm61 = vcmask 261120
    %v63 = vsel %vm61, %v37, 0
    %65 = vmatprep.subr.bf16.mxu0 0
    %66 = vmatpush1.bf16.msra.mxu0 %v57
    %67 = vmatprep.subr.bf16.mxu0 0
    %68 = vmatpush1.bf16.msra.mxu0 %v58
    %69 = vmatprep.subr.bf16.mxu0 0
    %70 = vmatpush1.bf16.msra.mxu0 0
    %71 = vmatprep.subr.bf16.mxu0 0
    %72 = vmatpush1.bf16.msra.mxu0 0
    %73 = vmatprep.subr.bf16.mxu0 0
    %74 = vmatpush1.bf16.msra.mxu0 0
    %75 = vmatprep.subr.bf16.mxu0 0
    %76 = vmatpush1.bf16.msra.mxu0 0
    %77 = vmatprep.subr.bf16.mxu0 0
    %78 = vmatpush1.bf16.msra.mxu0 0
    %79 = vmatprep.subr.bf16.mxu0 0
    %80 = vmatpush1.bf16.msra.mxu0 0
    %81 = vmatprep.subr.bf16.mxu0 0
    %82 = vmatpush1.bf16.msra.mxu0 0
    %83 = vmatprep.subr.bf16.mxu0 0
    %84 = vmatpush1.bf16.msra.mxu0 0
    %85 = vmatprep.subr.bf16.mxu0 0
    %86 = vmatpush1.bf16.msra.mxu0 0
    %87 = vmatprep.subr.bf16.mxu0 0
    %88 = vmatpush1.bf16.msra.mxu0 0
    %89 = vmatprep.subr.bf16.mxu0 0
    %90 = vmatpush1.bf16.msra.mxu0 0
    %91 = vmatprep.subr.bf16.mxu0 0
    %92 = vmatpush1.bf16.msra.mxu0 0
    %93 = vmatprep.subr.bf16.mxu0 0
    %94 = vmatpush1.bf16.msra.mxu0 0
    %95 = vmatprep.subr.bf16.mxu0 0
    %96 = vmatpush1.bf16.msra.mxu0 0
    %97 = vmatprep.mubr.bf16.mxu0 0
    %98 = vmatmul.mubr.bf16.gmra.mrb[0].mxu0 %v63
    %v99 = vpop.f32.mrb[0].mxu0
    %v100 = vadd.f32 %v47, %v99
    %v101 = vpop.f32.mrb[0].mxu0
    %v102 = vpop.f32.mrb[0].mxu0
    %v103 = vpop.f32.mrb[0].mxu0
    %104 = vdwg.mxu0
    %105 = vst [vmem:[#allocation5] sm:$0xff] %v100
    %v106 = vlaneseq
    %v107 = vand.u32 %v106, 127
    %vm108 = vcmp.lt.s32.totalorder %v107, 4
    %v109 = vsel %vm108, %v100, -inf
    %110 = vmax.xlane.f32.xlu0 %v109
    %v111 = vpop.xlane.xlu0 %110
    %v112 = vsub.f32 %v109, %v111
    %v113 = vmul.f32 %v112, 1.442695
    %v114 = vpow.pop %v113
    %115 = vadd.xlane.f32.xlu0 %v114
    %v116 = vpop.xlane.xlu0 %115
    %v117 = vlog2.pop %v116
    %v118 = vmul.f32 %v117, 0.6931472
    %v119 = vadd.f32 %v118, %v111
    %v120 = vld [vmem:[%s3] sm:$0xff]
    %121 = vset.pattern.permute.xlu0 0
    %122 = vperm.xlu0 %121, %v120
    %v123 = vpop.permute.xlu0 %122
    %vm124 = vcmp.eq.s32.totalorder %v107, %v123
    %v125 = vsel %vm124, %v100, 0.0
    %126 = vadd.xlane.f32.xlu0 %v125
    %v127 = vpop.xlane.xlu0 %126
    %s128 = smul.u32 0, 8
    %v129 = vlaneseq
    %v130 = vshrl.u32 %v129, 7
    %v131 = vstv %s128
    %v132 = vadd.s32 %v131, %v130
    %vm133 = vcmp.lt.s32.totalorder %v132, 8
    %v134 = vsub.f32 %v119, %v127
    %v135 = vsel %vm133, %v134, 0.0
    %v136 = vrot.slane %v135, 4
    %v137 = vadd.f32 %v135, %v136
    %v138 = vrot.slane %v137, 2
    %v139 = vadd.f32 %v137, %v138
    %v140 = vrot.slane %v139, 1
    %v141 = vadd.f32 %v139, %v140
    %142 = vst [vmem:[#allocation6] sm:$0xff] %v141
    // Predicated region
    $region22: #{tpu_custom_call.1} parent=1 // pred_check
      _
    $region23: #{tpu_custom_call.1} parent=1 // pred_check_branch
      %144 = sbr.rel (0) target = $region25
    $region24: #{tpu_custom_call.1} parent=1 // pred_region
      %s146 = ssub.s32 128, 128
      %147 = vsyncadd [#allocation4], %s146
      %s149 = sshll.u32 [#allocation5], 4
      %s150 = int_to_ptr.vmem [resolvable:$true] %s149
      %152 = dma.vmem_to_hbm [thread:$0]  %s150, 128, %s4, [#allocation4]
    $region25: #{tpu_custom_call.1} parent=1 // pred_fallthru
      _
    // Predicated region
    $region26: #{tpu_custom_call.1} parent=1 // pred_check
      _
    $region27: #{tpu_custom_call.1} parent=1 // pred_check_branch
      %154 = sbr.rel (0) target = $region29
    $region28: #{tpu_custom_call.1} parent=1 // pred_region
      %s156 = ssub.s32 128, 128
      %157 = vsyncadd [#allocation7], %s156
      %s159 = sshll.u32 [#allocation6], 4
      %s160 = int_to_ptr.vmem [resolvable:$true] %s159
      %162 = dma.vmem_to_hbm [thread:$0]  %s160, 128, %s5, [#allocation7]
    $region29: #{tpu_custom_call.1} parent=1 // pred_fallthru
      _
    // Predicated region
    $region30: #{tpu_custom_call.1} parent=1 // pred_check
      _
    $region31: #{tpu_custom_call.1} parent=1 // pred_check_branch
      %164 = sbr.rel (0) target = $region33
    $region32: #{tpu_custom_call.1} parent=1 // pred_region
      %165 = dma.done [#allocation4], 128
    $region33: #{tpu_custom_call.1} parent=1 // pred_fallthru
      _
    // Predicated region
    $region34: #{tpu_custom_call.1} parent=1 // pred_check
      _
    $region35: #{tpu_custom_call.1} parent=1 // pred_check_branch
      %167 = sbr.rel (0) target = $region37
    $region36: #{tpu_custom_call.1} parent=1 // pred_region
      %168 = dma.done [#allocation7], 128
    $region37: #{tpu_custom_call.1} parent=1 // pred_fallthru
      _
    %169 = vsyncpa [#allocation3], 1
    %170 = vsyncpa [#allocation4], 1
    %171 = vsyncpa [#allocation7], 1

</llo_original>
